<compile_context>
chip_gen: v5e
topology: v5e:2x2
jax: 0.10.0
libtpu: 0.0.40
codegen_flags: <defaults>
</compile_context>

<pallas_src>
import jax
import jax.numpy as jnp
import numpy as np
from jax.experimental import pallas as pl
from jax.experimental.pallas import tpu as pltpu


def lstm_recurrence_kernel(xw_ref, w_hh_ref, bias_ref, h_out_ref):
    """Serial LSTM recurrence over all T steps in a single kernel invocation.

    xw_ref:   (T, B_pad, 4H)  precomputed x_t @ W_ih^T (no bias)
    w_hh_ref: (H, 4H)         recurrent weight, already transposed
    bias_ref: (1, 4H)         fused bias b_ih + b_hh
    h_out_ref:(B_pad, H)      last hidden state
    """
    T, B, _ = xw_ref.shape
    H = w_hh_ref.shape[0]

    # Grid-invariant operands loaded once, outside the loop.
    w_hh = w_hh_ref[...]
    bias = bias_ref[...]

    def step(t, carry):
        h, c = carry
        # Only the recurrent matmul sits on the serial critical path.
        gates = (xw_ref[t]
                 + jnp.dot(h, w_hh, preferred_element_type=jnp.float32)
                 + bias)                                  # (B, 4H) == one vreg row-set
        # Two full-vreg EUP passes instead of four quarter-utilized ones.
        sig = jax.nn.sigmoid(gates)
        th = jnp.tanh(gates)
        i = sig[:, 0 * H:1 * H]
        f = sig[:, 1 * H:2 * H]
        g = th[:, 2 * H:3 * H]
        o = sig[:, 3 * H:4 * H]
        c_new = f * c + i * g
        h_new = o * jnp.tanh(c_new)
        return (h_new, c_new)

    h0 = jnp.zeros((B, H), jnp.float32)
    c0 = jnp.zeros((B, H), jnp.float32)
    # Fully unrolled for small T: static indices into xw_ref, LLO gets full
    # visibility across consecutive steps.
    h_last, _ = jax.lax.fori_loop(0, T, step, (h0, c0), unroll=True)
    h_out_ref[...] = h_last


@jax.jit
def lstm_model_forward(x, w_ih, w_hh, b_ih, b_hh, w_fc, b_fc):
    """x: (B, T, D) float32.  Returns (B, 1) float32 (matches LSTMModel.forward)."""
    B, T, D = x.shape
    H = w_hh.shape[1]
    B_pad = ((B + 7) // 8) * 8                       # pad batch to sublane size

    x_p = x if B_pad == B else jnp.pad(x, ((0, B_pad - B), (0, 0), (0, 0)))
    x_tm = jnp.transpose(x_p, (1, 0, 2))             # (T, B_pad, D) time-major

    w_ih_t = jnp.transpose(w_ih)                     # (D, 4H)
    w_hh_t = jnp.transpose(w_hh)                     # (H, 4H)
    bias = (b_ih + b_hh).reshape(1, 4 * H)           # fused bias, added in-kernel

    # Hoisted input projection for all T at once: one large lane-dense MXU
    # matmul (M = T*B_pad), off the serial chain.
    xw = (x_tm.reshape(T * B_pad, D) @ w_ih_t).reshape(T, B_pad, 4 * H)

    h_last = pl.pallas_call(
        lstm_recurrence_kernel,
        out_shape=jax.ShapeDtypeStruct((B_pad, H), jnp.float32),
        # No grid: single invocation, whole arrays resident in VMEM,
        # single-buffered (nothing to pipeline).
        in_specs=[
            pl.BlockSpec(memory_space=pltpu.MemorySpace.VMEM),   # xw
            pl.BlockSpec(memory_space=pltpu.MemorySpace.VMEM),   # W_hh^T
            pl.BlockSpec(memory_space=pltpu.MemorySpace.VMEM),   # fused bias
        ],
        out_specs=pl.BlockSpec(memory_space=pltpu.MemorySpace.VMEM),
    )(xw, w_hh_t, bias)

    # Final FC on the last hidden state, lane-dense in the wrapper via XLA.
    return h_last[:B] @ jnp.transpose(w_fc) + b_fc   # (B, 1)


def reference_forward(x, w_ih, w_hh, b_ih, b_hh, w_fc, b_fc):
    """Pure-JAX reference matching torch.nn.LSTM + Linear semantics."""
    B, T, D = x.shape
    H = w_hh.shape[1]
    h = jnp.zeros((B, H), jnp.float32)
    c = jnp.zeros((B, H), jnp.float32)
    for t in range(T):
        gates = x[:, t, :] @ w_ih.T + h @ w_hh.T + b_ih + b_hh
        i = jax.nn.sigmoid(gates[:, 0 * H:1 * H])
        f = jax.nn.sigmoid(gates[:, 1 * H:2 * H])
        g = jnp.tanh(gates[:, 2 * H:3 * H])
        o = jax.nn.sigmoid(gates[:, 3 * H:4 * H])
        c = f * c + i * g
        h = o * jnp.tanh(c)
    return h @ w_fc.T + b_fc


if __name__ == "__main__":
    # Small, deterministic shapes: batch=2, seq=8, input_size=16, hidden=32.
    B, T, D, H = 2, 8, 16, 32

    key = jax.random.PRNGKey(0)
    kx, k1, k2, k3, k4, k5, k6 = jax.random.split(key, 7)
    bound = 1.0 / np.sqrt(H)   # PyTorch default LSTM/Linear init range

    x = jax.random.normal(kx, (B, T, D), jnp.float32)
    w_ih = jax.random.uniform(k1, (4 * H, D), jnp.float32, -bound, bound)
    w_hh = jax.random.uniform(k2, (4 * H, H), jnp.float32, -bound, bound)
    b_ih = jax.random.uniform(k3, (4 * H,), jnp.float32, -bound, bound)
    b_hh = jax.random.uniform(k4, (4 * H,), jnp.float32, -bound, bound)
    w_fc = jax.random.uniform(k5, (1, H), jnp.float32, -bound, bound)
    b_fc = jax.random.uniform(k6, (1,), jnp.float32, -bound, bound)

    out = lstm_model_forward(x, w_ih, w_hh, b_ih, b_hh, w_fc, b_fc)
    out = jax.block_until_ready(out)

    ref = reference_forward(x, w_ih, w_hh, b_ih, b_hh, w_fc, b_fc)
    np.testing.assert_allclose(np.asarray(out), np.asarray(ref),
                               rtol=1e-4, atol=1e-4)

    assert out.shape == (B, 1)
    print("KERNEL_OK")
</pallas_src>

<mosaic_0001>
module attributes {stable_mosaic.version = 11 : i64} {
  func.func @lstm_recurrence_kernel(%arg0: memref<8x8x128xf32, #tpu.memory_space<vmem>>, %arg1: memref<32x128xf32, #tpu.memory_space<vmem>>, %arg2: memref<1x128xf32, #tpu.memory_space<vmem>>, %arg3: memref<8x32xf32, #tpu.memory_space<vmem>>) attributes {dimension_semantics = [], scalar_prefetch = 0 : i64, scratch_operands = 0 : i64, tpu.core_type = #tpu.core_type<tc>} {
    %c0 = arith.constant 0 : index
    %c0_0 = arith.constant 0 : index
    %0 = vector.load %arg1[%c0, %c0_0] : memref<32x128xf32, #tpu.memory_space<vmem>>, vector<32x128xf32>
    %c0_1 = arith.constant 0 : index
    %c0_2 = arith.constant 0 : index
    %1 = vector.load %arg2[%c0_1, %c0_2] : memref<1x128xf32, #tpu.memory_space<vmem>>, vector<1x128xf32>
    %cst = arith.constant 0.000000e+00 : f32
    %2 = vector.broadcast %cst : f32 to vector<8x32xf32>
    %cst_3 = arith.constant 0.000000e+00 : f32
    %3 = vector.broadcast %cst_3 : f32 to vector<8x32xf32>
    %c0_i32 = arith.constant 0 : i32
    %4 = arith.index_cast %c0_i32 : i32 to index
    %c0_4 = arith.constant 0 : index
    %c0_5 = arith.constant 0 : index
    %5 = vector.load %arg0[%4, %c0_4, %c0_5] : memref<8x8x128xf32, #tpu.memory_space<vmem>>, vector<1x8x128xf32>
    %6 = vector.shape_cast %5 : vector<1x8x128xf32> to vector<8x128xf32>
    %cst_6 = arith.constant dense<0.000000e+00> : vector<8x128xf32>
    %7 = tpu.matmul %2, %0, %cst_6 {dimension_numbers = #tpu.dot_dimension_numbers<[1], [0], [0], [1], [0, 0, 1, 1], [], []>} : vector<8x32xf32>, vector<32x128xf32>, vector<8x128xf32> -> vector<8x128xf32>
    %8 = arith.addf %6, %7 : vector<8x128xf32>
    %9 = vector.broadcast %1 : vector<1x128xf32> to vector<8x128xf32>
    %10 = arith.addf %8, %9 : vector<8x128xf32>
    %11 = arith.negf %10 : vector<8x128xf32>
    %12 = math.exp %11 : vector<8x128xf32>
    %cst_7 = arith.constant 1.000000e+00 : f32
    %13 = vector.broadcast %cst_7 : f32 to vector<8x128xf32>
    %14 = arith.addf %13, %12 : vector<8x128xf32>
    %15 = arith.divf %13, %14 : vector<8x128xf32>
    %16 = math.tanh %10 : vector<8x128xf32>
    %17 = vector.extract_strided_slice %15 {offsets = [0, 0], sizes = [8, 32], strides = [1, 1]} : vector<8x128xf32> to vector<8x32xf32>
    %18 = vector.extract_strided_slice %15 {offsets = [0, 32], sizes = [8, 32], strides = [1, 1]} : vector<8x128xf32> to vector<8x32xf32>
    %19 = vector.extract_strided_slice %16 {offsets = [0, 64], sizes = [8, 32], strides = [1, 1]} : vector<8x128xf32> to vector<8x32xf32>
    %20 = vector.extract_strided_slice %15 {offsets = [0, 96], sizes = [8, 32], strides = [1, 1]} : vector<8x128xf32> to vector<8x32xf32>
    %21 = arith.mulf %18, %3 : vector<8x32xf32>
    %22 = arith.mulf %17, %19 : vector<8x32xf32>
    %23 = arith.addf %21, %22 : vector<8x32xf32>
    %24 = math.tanh %23 : vector<8x32xf32>
    %25 = arith.mulf %20, %24 : vector<8x32xf32>
    %c1_i32 = arith.constant 1 : i32
    %26 = arith.index_cast %c1_i32 : i32 to index
    %c0_8 = arith.constant 0 : index
    %c0_9 = arith.constant 0 : index
    %27 = vector.load %arg0[%26, %c0_8, %c0_9] : memref<8x8x128xf32, #tpu.memory_space<vmem>>, vector<1x8x128xf32>
    %28 = vector.shape_cast %27 : vector<1x8x128xf32> to vector<8x128xf32>
    %cst_10 = arith.constant dense<0.000000e+00> : vector<8x128xf32>
    %29 = tpu.matmul %25, %0, %cst_10 {dimension_numbers = #tpu.dot_dimension_numbers<[1], [0], [0], [1], [0, 0, 1, 1], [], []>} : vector<8x32xf32>, vector<32x128xf32>, vector<8x128xf32> -> vector<8x128xf32>
    %30 = arith.addf %28, %29 : vector<8x128xf32>
    %31 = vector.broadcast %1 : vector<1x128xf32> to vector<8x128xf32>
    %32 = arith.addf %30, %31 : vector<8x128xf32>
    %33 = arith.negf %32 : vector<8x128xf32>
    %34 = math.exp %33 : vector<8x128xf32>
    %cst_11 = arith.constant 1.000000e+00 : f32
    %35 = vector.broadcast %cst_11 : f32 to vector<8x128xf32>
    %36 = arith.addf %35, %34 : vector<8x128xf32>
    %37 = arith.divf %35, %36 : vector<8x128xf32>
    %38 = math.tanh %32 : vector<8x128xf32>
    %39 = vector.extract_strided_slice %37 {offsets = [0, 0], sizes = [8, 32], strides = [1, 1]} : vector<8x128xf32> to vector<8x32xf32>
    %40 = vector.extract_strided_slice %37 {offsets = [0, 32], sizes = [8, 32], strides = [1, 1]} : vector<8x128xf32> to vector<8x32xf32>
    %41 = vector.extract_strided_slice %38 {offsets = [0, 64], sizes = [8, 32], strides = [1, 1]} : vector<8x128xf32> to vector<8x32xf32>
    %42 = vector.extract_strided_slice %37 {offsets = [0, 96], sizes = [8, 32], strides = [1, 1]} : vector<8x128xf32> to vector<8x32xf32>
    %43 = arith.mulf %40, %23 : vector<8x32xf32>
    %44 = arith.mulf %39, %41 : vector<8x32xf32>
    %45 = arith.addf %43, %44 : vector<8x32xf32>
    %46 = math.tanh %45 : vector<8x32xf32>
    %47 = arith.mulf %42, %46 : vector<8x32xf32>
    %c2_i32 = arith.constant 2 : i32
    %48 = arith.index_cast %c2_i32 : i32 to index
    %c0_12 = arith.constant 0 : index
    %c0_13 = arith.constant 0 : index
    %49 = vector.load %arg0[%48, %c0_12, %c0_13] : memref<8x8x128xf32, #tpu.memory_space<vmem>>, vector<1x8x128xf32>
    %50 = vector.shape_cast %49 : vector<1x8x128xf32> to vector<8x128xf32>
    %cst_14 = arith.constant dense<0.000000e+00> : vector<8x128xf32>
    %51 = tpu.matmul %47, %0, %cst_14 {dimension_numbers = #tpu.dot_dimension_numbers<[1], [0], [0], [1], [0, 0, 1, 1], [], []>} : vector<8x32xf32>, vector<32x128xf32>, vector<8x128xf32> -> vector<8x128xf32>
    %52 = arith.addf %50, %51 : vector<8x128xf32>
    %53 = vector.broadcast %1 : vector<1x128xf32> to vector<8x128xf32>
    %54 = arith.addf %52, %53 : vector<8x128xf32>
    %55 = arith.negf %54 : vector<8x128xf32>
    %56 = math.exp %55 : vector<8x128xf32>
    %cst_15 = arith.constant 1.000000e+00 : f32
    %57 = vector.broadcast %cst_15 : f32 to vector<8x128xf32>
    %58 = arith.addf %57, %56 : vector<8x128xf32>
    %59 = arith.divf %57, %58 : vector<8x128xf32>
    %60 = math.tanh %54 : vector<8x128xf32>
    %61 = vector.extract_strided_slice %59 {offsets = [0, 0], sizes = [8, 32], strides = [1, 1]} : vector<8x128xf32> to vector<8x32xf32>
    %62 = vector.extract_strided_slice %59 {offsets = [0, 32], sizes = [8, 32], strides = [1, 1]} : vector<8x128xf32> to vector<8x32xf32>
    %63 = vector.extract_strided_slice %60 {offsets = [0, 64], sizes = [8, 32], strides = [1, 1]} : vector<8x128xf32> to vector<8x32xf32>
    %64 = vector.extract_strided_slice %59 {offsets = [0, 96], sizes = [8, 32], strides = [1, 1]} : vector<8x128xf32> to vector<8x32xf32>
    %65 = arith.mulf %62, %45 : vector<8x32xf32>
    %66 = arith.mulf %61, %63 : vector<8x32xf32>
    %67 = arith.addf %65, %66 : vector<8x32xf32>
    %68 = math.tanh %67 : vector<8x32xf32>
    %69 = arith.mulf %64, %68 : vector<8x32xf32>
    %c3_i32 = arith.constant 3 : i32
    %70 = arith.index_cast %c3_i32 : i32 to index
    %c0_16 = arith.constant 0 : index
    %c0_17 = arith.constant 0 : index
    %71 = vector.load %arg0[%70, %c0_16, %c0_17] : memref<8x8x128xf32, #tpu.memory_space<vmem>>, vector<1x8x128xf32>
    %72 = vector.shape_cast %71 : vector<1x8x128xf32> to vector<8x128xf32>
    %cst_18 = arith.constant dense<0.000000e+00> : vector<8x128xf32>
    %73 = tpu.matmul %69, %0, %cst_18 {dimension_numbers = #tpu.dot_dimension_numbers<[1], [0], [0], [1], [0, 0, 1, 1], [], []>} : vector<8x32xf32>, vector<32x128xf32>, vector<8x128xf32> -> vector<8x128xf32>
    %74 = arith.addf %72, %73 : vector<8x128xf32>
    %75 = vector.broadcast %1 : vector<1x128xf32> to vector<8x128xf32>
    %76 = arith.addf %74, %75 : vector<8x128xf32>
    %77 = arith.negf %76 : vector<8x128xf32>
    %78 = math.exp %77 : vector<8x128xf32>
    %cst_19 = arith.constant 1.000000e+00 : f32
    %79 = vector.broadcast %cst_19 : f32 to vector<8x128xf32>
    %80 = arith.addf %79, %78 : vector<8x128xf32>
    %81 = arith.divf %79, %80 : vector<8x128xf32>
    %82 = math.tanh %76 : vector<8x128xf32>
    %83 = vector.extract_strided_slice %81 {offsets = [0, 0], sizes = [8, 32], strides = [1, 1]} : vector<8x128xf32> to vector<8x32xf32>
    %84 = vector.extract_strided_slice %81 {offsets = [0, 32], sizes = [8, 32], strides = [1, 1]} : vector<8x128xf32> to vector<8x32xf32>
    %85 = vector.extract_strided_slice %82 {offsets = [0, 64], sizes = [8, 32], strides = [1, 1]} : vector<8x128xf32> to vector<8x32xf32>
    %86 = vector.extract_strided_slice %81 {offsets = [0, 96], sizes = [8, 32], strides = [1, 1]} : vector<8x128xf32> to vector<8x32xf32>
    %87 = arith.mulf %84, %67 : vector<8x32xf32>
    %88 = arith.mulf %83, %85 : vector<8x32xf32>
    %89 = arith.addf %87, %88 : vector<8x32xf32>
    %90 = math.tanh %89 : vector<8x32xf32>
    %91 = arith.mulf %86, %90 : vector<8x32xf32>
    %c4_i32 = arith.constant 4 : i32
    %92 = arith.index_cast %c4_i32 : i32 to index
    %c0_20 = arith.constant 0 : index
    %c0_21 = arith.constant 0 : index
    %93 = vector.load %arg0[%92, %c0_20, %c0_21] : memref<8x8x128xf32, #tpu.memory_space<vmem>>, vector<1x8x128xf32>
    %94 = vector.shape_cast %93 : vector<1x8x128xf32> to vector<8x128xf32>
    %cst_22 = arith.constant dense<0.000000e+00> : vector<8x128xf32>
    %95 = tpu.matmul %91, %0, %cst_22 {dimension_numbers = #tpu.dot_dimension_numbers<[1], [0], [0], [1], [0, 0, 1, 1], [], []>} : vector<8x32xf32>, vector<32x128xf32>, vector<8x128xf32> -> vector<8x128xf32>
    %96 = arith.addf %94, %95 : vector<8x128xf32>
    %97 = vector.broadcast %1 : vector<1x128xf32> to vector<8x128xf32>
    %98 = arith.addf %96, %97 : vector<8x128xf32>
    %99 = arith.negf %98 : vector<8x128xf32>
    %100 = math.exp %99 : vector<8x128xf32>
    %cst_23 = arith.constant 1.000000e+00 : f32
    %101 = vector.broadcast %cst_23 : f32 to vector<8x128xf32>
    %102 = arith.addf %101, %100 : vector<8x128xf32>
    %103 = arith.divf %101, %102 : vector<8x128xf32>
    %104 = math.tanh %98 : vector<8x128xf32>
    %105 = vector.extract_strided_slice %103 {offsets = [0, 0], sizes = [8, 32], strides = [1, 1]} : vector<8x128xf32> to vector<8x32xf32>
    %106 = vector.extract_strided_slice %103 {offsets = [0, 32], sizes = [8, 32], strides = [1, 1]} : vector<8x128xf32> to vector<8x32xf32>
    %107 = vector.extract_strided_slice %104 {offsets = [0, 64], sizes = [8, 32], strides = [1, 1]} : vector<8x128xf32> to vector<8x32xf32>
    %108 = vector.extract_strided_slice %103 {offsets = [0, 96], sizes = [8, 32], strides = [1, 1]} : vector<8x128xf32> to vector<8x32xf32>
    %109 = arith.mulf %106, %89 : vector<8x32xf32>
    %110 = arith.mulf %105, %107 : vector<8x32xf32>
    %111 = arith.addf %109, %110 : vector<8x32xf32>
    %112 = math.tanh %111 : vector<8x32xf32>
    %113 = arith.mulf %108, %112 : vector<8x32xf32>
    %c5_i32 = arith.constant 5 : i32
    %114 = arith.index_cast %c5_i32 : i32 to index
    %c0_24 = arith.constant 0 : index
    %c0_25 = arith.constant 0 : index
    %115 = vector.load %arg0[%114, %c0_24, %c0_25] : memref<8x8x128xf32, #tpu.memory_space<vmem>>, vector<1x8x128xf32>
    %116 = vector.shape_cast %115 : vector<1x8x128xf32> to vector<8x128xf32>
    %cst_26 = arith.constant dense<0.000000e+00> : vector<8x128xf32>
    %117 = tpu.matmul %113, %0, %cst_26 {dimension_numbers = #tpu.dot_dimension_numbers<[1], [0], [0], [1], [0, 0, 1, 1], [], []>} : vector<8x32xf32>, vector<32x128xf32>, vector<8x128xf32> -> vector<8x128xf32>
    %118 = arith.addf %116, %117 : vector<8x128xf32>
    %119 = vector.broadcast %1 : vector<1x128xf32> to vector<8x128xf32>
    %120 = arith.addf %118, %119 : vector<8x128xf32>
    %121 = arith.negf %120 : vector<8x128xf32>
    %122 = math.exp %121 : vector<8x128xf32>
    %cst_27 = arith.constant 1.000000e+00 : f32
    %123 = vector.broadcast %cst_27 : f32 to vector<8x128xf32>
    %124 = arith.addf %123, %122 : vector<8x128xf32>
    %125 = arith.divf %123, %124 : vector<8x128xf32>
    %126 = math.tanh %120 : vector<8x128xf32>
    %127 = vector.extract_strided_slice %125 {offsets = [0, 0], sizes = [8, 32], strides = [1, 1]} : vector<8x128xf32> to vector<8x32xf32>
    %128 = vector.extract_strided_slice %125 {offsets = [0, 32], sizes = [8, 32], strides = [1, 1]} : vector<8x128xf32> to vector<8x32xf32>
    %129 = vector.extract_strided_slice %126 {offsets = [0, 64], sizes = [8, 32], strides = [1, 1]} : vector<8x128xf32> to vector<8x32xf32>
    %130 = vector.extract_strided_slice %125 {offsets = [0, 96], sizes = [8, 32], strides = [1, 1]} : vector<8x128xf32> to vector<8x32xf32>
    %131 = arith.mulf %128, %111 : vector<8x32xf32>
    %132 = arith.mulf %127, %129 : vector<8x32xf32>
    %133 = arith.addf %131, %132 : vector<8x32xf32>
    %134 = math.tanh %133 : vector<8x32xf32>
    %135 = arith.mulf %130, %134 : vector<8x32xf32>
    %c6_i32 = arith.constant 6 : i32
    %136 = arith.index_cast %c6_i32 : i32 to index
    %c0_28 = arith.constant 0 : index
    %c0_29 = arith.constant 0 : index
    %137 = vector.load %arg0[%136, %c0_28, %c0_29] : memref<8x8x128xf32, #tpu.memory_space<vmem>>, vector<1x8x128xf32>
    %138 = vector.shape_cast %137 : vector<1x8x128xf32> to vector<8x128xf32>
    %cst_30 = arith.constant dense<0.000000e+00> : vector<8x128xf32>
    %139 = tpu.matmul %135, %0, %cst_30 {dimension_numbers = #tpu.dot_dimension_numbers<[1], [0], [0], [1], [0, 0, 1, 1], [], []>} : vector<8x32xf32>, vector<32x128xf32>, vector<8x128xf32> -> vector<8x128xf32>
    %140 = arith.addf %138, %139 : vector<8x128xf32>
    %141 = vector.broadcast %1 : vector<1x128xf32> to vector<8x128xf32>
    %142 = arith.addf %140, %141 : vector<8x128xf32>
    %143 = arith.negf %142 : vector<8x128xf32>
    %144 = math.exp %143 : vector<8x128xf32>
    %cst_31 = arith.constant 1.000000e+00 : f32
    %145 = vector.broadcast %cst_31 : f32 to vector<8x128xf32>
    %146 = arith.addf %145, %144 : vector<8x128xf32>
    %147 = arith.divf %145, %146 : vector<8x128xf32>
    %148 = math.tanh %142 : vector<8x128xf32>
    %149 = vector.extract_strided_slice %147 {offsets = [0, 0], sizes = [8, 32], strides = [1, 1]} : vector<8x128xf32> to vector<8x32xf32>
    %150 = vector.extract_strided_slice %147 {offsets = [0, 32], sizes = [8, 32], strides = [1, 1]} : vector<8x128xf32> to vector<8x32xf32>
    %151 = vector.extract_strided_slice %148 {offsets = [0, 64], sizes = [8, 32], strides = [1, 1]} : vector<8x128xf32> to vector<8x32xf32>
    %152 = vector.extract_strided_slice %147 {offsets = [0, 96], sizes = [8, 32], strides = [1, 1]} : vector<8x128xf32> to vector<8x32xf32>
    %153 = arith.mulf %150, %133 : vector<8x32xf32>
    %154 = arith.mulf %149, %151 : vector<8x32xf32>
    %155 = arith.addf %153, %154 : vector<8x32xf32>
    %156 = math.tanh %155 : vector<8x32xf32>
    %157 = arith.mulf %152, %156 : vector<8x32xf32>
    %c7_i32 = arith.constant 7 : i32
    %158 = arith.index_cast %c7_i32 : i32 to index
    %c0_32 = arith.constant 0 : index
    %c0_33 = arith.constant 0 : index
    %159 = vector.load %arg0[%158, %c0_32, %c0_33] : memref<8x8x128xf32, #tpu.memory_space<vmem>>, vector<1x8x128xf32>
    %160 = vector.shape_cast %159 : vector<1x8x128xf32> to vector<8x128xf32>
    %cst_34 = arith.constant dense<0.000000e+00> : vector<8x128xf32>
    %161 = tpu.matmul %157, %0, %cst_34 {dimension_numbers = #tpu.dot_dimension_numbers<[1], [0], [0], [1], [0, 0, 1, 1], [], []>} : vector<8x32xf32>, vector<32x128xf32>, vector<8x128xf32> -> vector<8x128xf32>
    %162 = arith.addf %160, %161 : vector<8x128xf32>
    %163 = vector.broadcast %1 : vector<1x128xf32> to vector<8x128xf32>
    %164 = arith.addf %162, %163 : vector<8x128xf32>
    %165 = arith.negf %164 : vector<8x128xf32>
    %166 = math.exp %165 : vector<8x128xf32>
    %cst_35 = arith.constant 1.000000e+00 : f32
    %167 = vector.broadcast %cst_35 : f32 to vector<8x128xf32>
    %168 = arith.addf %167, %166 : vector<8x128xf32>
    %169 = arith.divf %167, %168 : vector<8x128xf32>
    %170 = math.tanh %164 : vector<8x128xf32>
    %171 = vector.extract_strided_slice %169 {offsets = [0, 0], sizes = [8, 32], strides = [1, 1]} : vector<8x128xf32> to vector<8x32xf32>
    %172 = vector.extract_strided_slice %169 {offsets = [0, 32], sizes = [8, 32], strides = [1, 1]} : vector<8x128xf32> to vector<8x32xf32>
    %173 = vector.extract_strided_slice %170 {offsets = [0, 64], sizes = [8, 32], strides = [1, 1]} : vector<8x128xf32> to vector<8x32xf32>
    %174 = vector.extract_strided_slice %169 {offsets = [0, 96], sizes = [8, 32], strides = [1, 1]} : vector<8x128xf32> to vector<8x32xf32>
    %175 = arith.mulf %172, %155 : vector<8x32xf32>
    %176 = arith.mulf %171, %173 : vector<8x32xf32>
    %177 = arith.addf %175, %176 : vector<8x32xf32>
    %178 = math.tanh %177 : vector<8x32xf32>
    %179 = arith.mulf %174, %178 : vector<8x32xf32>
    %c8_i32 = arith.constant 8 : i32
    %c0_36 = arith.constant 0 : index
    %c0_37 = arith.constant 0 : index
    %180 = vector.load %arg3[%c0_36, %c0_37] : memref<8x32xf32, #tpu.memory_space<vmem>>, vector<8x32xf32>
    tpu.vector_store %arg3[%c0_36, %c0_37], %179 {strides = array<i32>} : memref<8x32xf32, #tpu.memory_space<vmem>>, vector<8x32xf32>,
    return
  }
}

</mosaic_0001>

<llo_original>
// kernel: lstm_model_forward.1
$region0: #{lstm_model_forward.1}
  #allocation0 [shape = 'u32[]', space=smem, size = 0x4, offset = 0x4, fixed_abs, tag = 'smem constant byte address 0x4 - core index']
  #allocation1 [shape = 'u32[72,128]{1,0:T(1,128)}', space=vmem, size = 0x9000, scoped, tag = 'internal scratch']
  %s0 = inlined_call_operand.vmem [shape: f32[8,8,128], index: 0, kind: input, shape index: {}]
  %s1 = inlined_call_operand.vmem [shape: f32[32,128], index: 1, kind: input, shape index: {}]
  %s2 = inlined_call_operand.vmem [shape: f32[1,128], index: 2, kind: input, shape index: {}]
  %s3 = inlined_call_operand.vmem [shape: f32[8,32], index: 3, kind: output, shape index: {}]
  %s4 = sld [smem:[#allocation0]]
  $region22: #{lstm_model_forward.1} parent=0
    _
  %s6 = ssub.s32 1, %s4
  %s7 = scalar_select 0, %s6, %s4
  // Predicated region
  $region2: #{lstm_model_forward.1} parent=0 // pred_check
    _
  $region3: #{lstm_model_forward.1} parent=0 // pred_check_branch
    %9 = sbr.rel (0) target = $region5
  $region4: #{lstm_model_forward.1} parent=0 // pred_region
    _
  $region5: #{lstm_model_forward.1} parent=0 // pred_fallthru
    _
  // Predicated region
  $region6: #{lstm_model_forward.1} parent=0 // pred_check
    _
  $region7: #{lstm_model_forward.1} parent=0 // pred_check_branch
    %11 = sbr.rel (0) target = $region9
  $region8: #{lstm_model_forward.1} parent=0 // pred_region
    _
  $region9: #{lstm_model_forward.1} parent=0 // pred_fallthru
    _
  // Predicated region
  $region10: #{lstm_model_forward.1} parent=0 // pred_check
    _
  $region11: #{lstm_model_forward.1} parent=0 // pred_check_branch
    %13 = sbr.rel (0) target = $region13
  $region12: #{lstm_model_forward.1} parent=0 // pred_region
    _
  $region13: #{lstm_model_forward.1} parent=0 // pred_fallthru
    _
  %v14 = vld [vmem:[%s1] sm:$0xff]
  %v15 = vld [vmem:[%s1 + $0x8] sm:$0xff]
  %v16 = vld [vmem:[%s1 + $0x10] sm:$0xff]
  %v17 = vld [vmem:[%s1 + $0x18] sm:$0xff]
  %v18 = vld [vmem:[%s2] sm:$0x1]
  %v19 = vld [vmem:[%s0] sm:$0xff]
  %vm20 = vcmask 261120
  %v22 = vsel %vm20, 0.0, 0
  %24 = vmatpush.msra.mxu0 0.0
  %25 = vmatpush.msra.mxu0 0.0
  %26 = vmatpush.msra.mxu0 0.0
  %27 = vmatpush.msra.mxu0 0.0
  %28 = vmatpush.msra.mxu0 0.0
  %29 = vmatpush.msra.mxu0 0.0
  %30 = vmatpush.msra.mxu0 0.0
  %31 = vmatpush.msra.mxu0 0.0
  %32 = vmatpush.msra.mxu0 0.0
  %33 = vmatpush.msra.mxu0 0.0
  %34 = vmatpush.msra.mxu0 0.0
  %35 = vmatpush.msra.mxu0 0.0
  %36 = vmatpush.msra.mxu0 %v17
  %37 = vmatpush.msra.mxu0 %v16
  %38 = vmatpush.msra.mxu0 %v15
  %39 = vmatpush.msra.mxu0 %v14
  %40 = vmatmul.f32.gmra.mxu0 %v22
  %v41 = vpop.f32.mrf.mxu0
  %v42 = vadd.f32 0.0, %v41
  %43 = vdwg.mxu0
  %v44 = vadd.f32 %v19, %v42
  %v46 = vperm.slane %v18, 0
  %v48 = vadd.f32 %v44, %v46
  %v49 = vxor.u32 %v48, 2147483648
  %v50 = vmul.f32 %v49, 1.442695
  %v51 = vpow.pop %v50
  %v52 = vadd.f32 %v51, 1.0
  %v53 = vrcp.pop %v52
  %v54 = vmul.f32 %v52, %v53
  %v55 = vsub.f32 1.0, %v54
  %v56 = vmul.f32 %v53, %v55
  %v57 = vadd.f32 %v53, %v56
  %vm58 = vweird.f32 %v52
  %vm59 = vweird.f32 %v53
  %vm60 = vmor %vm58, %vm59
  %v61 = vsel %vm60, %v53, %v57
  %v62 = vand.u32 2147483647, %v52
  %vm63 = vcmp.eq.f32.partialorder %v62, 8.507059e+37
  %v64 = vand.u32 %v52, 2147483648
  %v65 = vor.u32 1.1754944e-38, %v64
  %v66 = vsel %vm63, %v65, %v61
  %v67 = vmul.f32 1.0, %v66
  %v68 = vtanh.pop %v48
  %v69 = vmul.f32 %v67, 0.0
  %71 = vrot.lane.b32.xlu0 %v68, 64
  %v72 = vpop.permute.xlu0 %71
  %v74 = vmul.f32 %v67, %v72
  %76 = vrot.lane.b32.xlu0 %v74, 32
  %v77 = vpop.permute.xlu0 %76
  %v79 = vadd.f32 %v69, %v77
  %v80 = vtanh.pop %v79
  %82 = vrot.lane.b32.xlu0 %v80, 64
  %v83 = vpop.permute.xlu0 %82
  %v85 = vmul.f32 %v67, %v83
  %s86 = scalar_lea.vmem %s0, 8
  %v87 = vld [vmem:[%s86] sm:$0xff]
  %89 = vrot.lane.b32.xlu0 %v85, 32
  %v90 = vpop.permute.xlu0 %89
  %v91 = vsel %vm20, %v90, 0
  %93 = vmatpush.msra.mxu0 0.0
  %94 = vmatpush.msra.mxu0 0.0
  %95 = vmatpush.msra.mxu0 0.0
  %96 = vmatpush.msra.mxu0 0.0
  %97 = vmatpush.msra.mxu0 0.0
  %98 = vmatpush.msra.mxu0 0.0
  %99 = vmatpush.msra.mxu0 0.0
  %100 = vmatpush.msra.mxu0 0.0
  %101 = vmatpush.msra.mxu0 0.0
  %102 = vmatpush.msra.mxu0 0.0
  %103 = vmatpush.msra.mxu0 0.0
  %104 = vmatpush.msra.mxu0 0.0
  %105 = vmatpush.msra.mxu0 %v17
  %106 = vmatpush.msra.mxu0 %v16
  %107 = vmatpush.msra.mxu0 %v15
  %108 = vmatpush.msra.mxu0 %v14
  %109 = vmatmul.f32.gmra.mxu0 %v91
  %v110 = vpop.f32.mrf.mxu0
  %v111 = vadd.f32 0.0, %v110
  %112 = vdwg.mxu0
  %v113 = vadd.f32 %v87, %v111
  %v114 = vadd.f32 %v113, %v46
  %v115 = vxor.u32 %v114, 2147483648
  %v116 = vmul.f32 %v115, 1.442695
  %v117 = vpow.pop %v116
  %v118 = vadd.f32 %v117, 1.0
  %v119 = vrcp.pop %v118
  %v120 = vmul.f32 %v118, %v119
  %v121 = vsub.f32 1.0, %v120
  %v122 = vmul.f32 %v119, %v121
  %v123 = vadd.f32 %v119, %v122
  %vm124 = vweird.f32 %v118
  %vm125 = vweird.f32 %v119
  %vm126 = vmor %vm124, %vm125
  %v127 = vsel %vm126, %v119, %v123
  %v128 = vand.u32 2147483647, %v118
  %vm129 = vcmp.eq.f32.partialorder %v128, 8.507059e+37
  %v130 = vand.u32 %v118, 2147483648
  %v131 = vor.u32 1.1754944e-38, %v130
  %v132 = vsel %vm129, %v131, %v127
  %v133 = vmul.f32 1.0, %v132
  %v134 = vtanh.pop %v114
  %v135 = vmul.f32 %v133, %v79
  %137 = vrot.lane.b32.xlu0 %v134, 64
  %v138 = vpop.permute.xlu0 %137
  %v140 = vmul.f32 %v133, %v138
  %142 = vrot.lane.b32.xlu0 %v140, 32
  %v143 = vpop.permute.xlu0 %142
  %v145 = vadd.f32 %v135, %v143
  %v146 = vtanh.pop %v145
  %148 = vrot.lane.b32.xlu0 %v146, 64
  %v149 = vpop.permute.xlu0 %148
  %v151 = vmul.f32 %v133, %v149
  %s152 = scalar_lea.vmem %s0, 16
  %v153 = vld [vmem:[%s152] sm:$0xff]
  %155 = vrot.lane.b32.xlu0 %v151, 32
  %v156 = vpop.permute.xlu0 %155
  %v157 = vsel %vm20, %v156, 0
  %159 = vmatpush.msra.mxu0 0.0
  %160 = vmatpush.msra.mxu0 0.0
  %161 = vmatpush.msra.mxu0 0.0
  %162 = vmatpush.msra.mxu0 0.0
  %163 = vmatpush.msra.mxu0 0.0
  %164 = vmatpush.msra.mxu0 0.0
  %165 = vmatpush.msra.mxu0 0.0
  %166 = vmatpush.msra.mxu0 0.0
  %167 = vmatpush.msra.mxu0 0.0
  %168 = vmatpush.msra.mxu0 0.0
  %169 = vmatpush.msra.mxu0 0.0
  %170 = vmatpush.msra.mxu0 0.0
  %171 = vmatpush.msra.mxu0 %v17
  %172 = vmatpush.msra.mxu0 %v16
  %173 = vmatpush.msra.mxu0 %v15
  %174 = vmatpush.msra.mxu0 %v14
  %175 = vmatmul.f32.gmra.mxu0 %v157
  %v176 = vpop.f32.mrf.mxu0
  %v177 = vadd.f32 0.0, %v176
  %178 = vdwg.mxu0
  %v179 = vadd.f32 %v153, %v177
  %v180 = vadd.f32 %v179, %v46
  %v181 = vxor.u32 %v180, 2147483648
  %v182 = vmul.f32 %v181, 1.442695
  %v183 = vpow.pop %v182
  %v184 = vadd.f32 %v183, 1.0
  %v185 = vrcp.pop %v184
  %v186 = vmul.f32 %v184, %v185
  %v187 = vsub.f32 1.0, %v186
  %v188 = vmul.f32 %v185, %v187
  %v189 = vadd.f32 %v185, %v188
  %vm190 = vweird.f32 %v184
  %vm191 = vweird.f32 %v185
  %vm192 = vmor %vm190, %vm191
  %v193 = vsel %vm192, %v185, %v189
  %v194 = vand.u32 2147483647, %v184
  %vm195 = vcmp.eq.f32.partialorder %v194, 8.507059e+37
  %v196 = vand.u32 %v184, 2147483648
  %v197 = vor.u32 1.1754944e-38, %v196
  %v198 = vsel %vm195, %v197, %v193
  %v199 = vmul.f32 1.0, %v198
  %v200 = vtanh.pop %v180
  %v201 = vmul.f32 %v199, %v145
  %203 = vrot.lane.b32.xlu0 %v200, 64
  %v204 = vpop.permute.xlu0 %203
  %v206 = vmul.f32 %v199, %v204
  %208 = vrot.lane.b32.xlu0 %v206, 32
  %v209 = vpop.permute.xlu0 %208
  %v211 = vadd.f32 %v201, %v209
  %v212 = vtanh.pop %v211
  %214 = vrot.lane.b32.xlu0 %v212, 64
  %v215 = vpop.permute.xlu0 %214
  %v217 = vmul.f32 %v199, %v215
  %s218 = scalar_lea.vmem %s0, 24
  %v219 = vld [vmem:[%s218] sm:$0xff]
  %221 = vrot.lane.b32.xlu0 %v217, 32
  %v222 = vpop.permute.xlu0 %221
  %v223 = vsel %vm20, %v222, 0
  %225 = vmatpush.msra.mxu0 0.0
  %226 = vmatpush.msra.mxu0 0.0
  %227 = vmatpush.msra.mxu0 0.0
  %228 = vmatpush.msra.mxu0 0.0
  %229 = vmatpush.msra.mxu0 0.0
  %230 = vmatpush.msra.mxu0 0.0
  %231 = vmatpush.msra.mxu0 0.0
  %232 = vmatpush.msra.mxu0 0.0
  %233 = vmatpush.msra.mxu0 0.0
  %234 = vmatpush.msra.mxu0 0.0
  %235 = vmatpush.msra.mxu0 0.0
  %236 = vmatpush.msra.mxu0 0.0
  %237 = vmatpush.msra.mxu0 %v17
  %238 = vmatpush.msra.mxu0 %v16
  %239 = vmatpush.msra.mxu0 %v15
  %240 = vmatpush.msra.mxu0 %v14
  %241 = vmatmul.f32.gmra.mxu0 %v223
  %v242 = vpop.f32.mrf.mxu0
  %v243 = vadd.f32 0.0, %v242
  %244 = vdwg.mxu0
  %v245 = vadd.f32 %v219, %v243
  %v246 = vadd.f32 %v245, %v46
  %v247 = vxor.u32 %v246, 2147483648
  %v248 = vmul.f32 %v247, 1.442695
  %v249 = vpow.pop %v248
  %v250 = vadd.f32 %v249, 1.0
  %v251 = vrcp.pop %v250
  %v252 = vmul.f32 %v250, %v251
  %v253 = vsub.f32 1.0, %v252
  %v254 = vmul.f32 %v251, %v253
  %v255 = vadd.f32 %v251, %v254
  %vm256 = vweird.f32 %v250
  %vm257 = vweird.f32 %v251
  %vm258 = vmor %vm256, %vm257
  %v259 = vsel %vm258, %v251, %v255
  %v260 = vand.u32 2147483647, %v250
  %vm261 = vcmp.eq.f32.partialorder %v260, 8.507059e+37
  %v262 = vand.u32 %v250, 2147483648
  %v263 = vor.u32 1.1754944e-38, %v262
  %v264 = vsel %vm261, %v263, %v259
  %v265 = vmul.f32 1.0, %v264
  %v266 = vtanh.pop %v246
  %v267 = vmul.f32 %v265, %v211
  %269 = vrot.lane.b32.xlu0 %v266, 64
  %v270 = vpop.permute.xlu0 %269
  %v272 = vmul.f32 %v265, %v270
  %274 = vrot.lane.b32.xlu0 %v272, 32
  %v275 = vpop.permute.xlu0 %274
  %v277 = vadd.f32 %v267, %v275
  %v278 = vtanh.pop %v277
  %280 = vrot.lane.b32.xlu0 %v278, 64
  %v281 = vpop.permute.xlu0 %280
  %v283 = vmul.f32 %v265, %v281
  %s284 = scalar_lea.vmem %s0, 32
  %v285 = vld [vmem:[%s284] sm:$0xff]
  %287 = vrot.lane.b32.xlu0 %v283, 32
  %v288 = vpop.permute.xlu0 %287
  %v289 = vsel %vm20, %v288, 0
  %291 = vmatpush.msra.mxu0 0.0
  %292 = vmatpush.msra.mxu0 0.0
  %293 = vmatpush.msra.mxu0 0.0
  %294 = vmatpush.msra.mxu0 0.0
  %295 = vmatpush.msra.mxu0 0.0
  %296 = vmatpush.msra.mxu0 0.0
  %297 = vmatpush.msra.mxu0 0.0
  %298 = vmatpush.msra.mxu0 0.0
  %299 = vmatpush.msra.mxu0 0.0
  %300 = vmatpush.msra.mxu0 0.0
  %301 = vmatpush.msra.mxu0 0.0
  %302 = vmatpush.msra.mxu0 0.0
  %303 = vmatpush.msra.mxu0 %v17
  %304 = vmatpush.msra.mxu0 %v16
  %305 = vmatpush.msra.mxu0 %v15
  %306 = vmatpush.msra.mxu0 %v14
  %307 = vmatmul.f32.gmra.mxu0 %v289
  %v308 = vpop.f32.mrf.mxu0
  %v309 = vadd.f32 0.0, %v308
  %310 = vdwg.mxu0
  %v311 = vadd.f32 %v285, %v309
  %v312 = vadd.f32 %v311, %v46
  %v313 = vxor.u32 %v312, 2147483648
  %v314 = vmul.f32 %v313, 1.442695
  %v315 = vpow.pop %v314
  %v316 = vadd.f32 %v315, 1.0
  %v317 = vrcp.pop %v316
  %v318 = vmul.f32 %v316, %v317
  %v319 = vsub.f32 1.0, %v318
  %v320 = vmul.f32 %v317, %v319
  %v321 = vadd.f32 %v317, %v320
  %vm322 = vweird.f32 %v316
  %vm323 = vweird.f32 %v317
  %vm324 = vmor %vm322, %vm323
  %v325 = vsel %vm324, %v317, %v321
  %v326 = vand.u32 2147483647, %v316
  %vm327 = vcmp.eq.f32.partialorder %v326, 8.507059e+37
  %v328 = vand.u32 %v316, 2147483648
  %v329 = vor.u32 1.1754944e-38, %v328
  %v330 = vsel %vm327, %v329, %v325
  %v331 = vmul.f32 1.0, %v330
  %v332 = vtanh.pop %v312
  %v333 = vmul.f32 %v331, %v277
  %335 = vrot.lane.b32.xlu0 %v332, 64
  %v336 = vpop.permute.xlu0 %335
  %v338 = vmul.f32 %v331, %v336
  %340 = vrot.lane.b32.xlu0 %v338, 32
  %v341 = vpop.permute.xlu0 %340
  %v343 = vadd.f32 %v333, %v341
  %v344 = vtanh.pop %v343
  %346 = vrot.lane.b32.xlu0 %v344, 64
  %v347 = vpop.permute.xlu0 %346
  %v349 = vmul.f32 %v331, %v347
  %s350 = scalar_lea.vmem %s0, 40
  %v351 = vld [vmem:[%s350] sm:$0xff]
  %353 = vrot.lane.b32.xlu0 %v349, 32
  %v354 = vpop.permute.xlu0 %353
  %v355 = vsel %vm20, %v354, 0
  %357 = vmatpush.msra.mxu0 0.0
  %358 = vmatpush.msra.mxu0 0.0
  %359 = vmatpush.msra.mxu0 0.0
  %360 = vmatpush.msra.mxu0 0.0
  %361 = vmatpush.msra.mxu0 0.0
  %362 = vmatpush.msra.mxu0 0.0
  %363 = vmatpush.msra.mxu0 0.0
  %364 = vmatpush.msra.mxu0 0.0
  %365 = vmatpush.msra.mxu0 0.0
  %366 = vmatpush.msra.mxu0 0.0
  %367 = vmatpush.msra.mxu0 0.0
  %368 = vmatpush.msra.mxu0 0.0
  %369 = vmatpush.msra.mxu0 %v17
  %370 = vmatpush.msra.mxu0 %v16
  %371 = vmatpush.msra.mxu0 %v15
  %372 = vmatpush.msra.mxu0 %v14
  %373 = vmatmul.f32.gmra.mxu0 %v355
  %v374 = vpop.f32.mrf.mxu0
  %v375 = vadd.f32 0.0, %v374
  %376 = vdwg.mxu0
  %v377 = vadd.f32 %v351, %v375
  %v378 = vadd.f32 %v377, %v46
  %v379 = vxor.u32 %v378, 2147483648
  %v380 = vmul.f32 %v379, 1.442695
  %v381 = vpow.pop %v380
  %v382 = vadd.f32 %v381, 1.0
  %v383 = vrcp.pop %v382
  %v384 = vmul.f32 %v382, %v383
  %v385 = vsub.f32 1.0, %v384
  %v386 = vmul.f32 %v383, %v385
  %v387 = vadd.f32 %v383, %v386
  %vm388 = vweird.f32 %v382
  %vm389 = vweird.f32 %v383
  %vm390 = vmor %vm388, %vm389
  %v391 = vsel %vm390, %v383, %v387
  %v392 = vand.u32 2147483647, %v382
  %vm393 = vcmp.eq.f32.partialorder %v392, 8.507059e+37
  %v394 = vand.u32 %v382, 2147483648
  %v395 = vor.u32 1.1754944e-38, %v394
  %v396 = vsel %vm393, %v395, %v391
  %v397 = vmul.f32 1.0, %v396
  %v398 = vtanh.pop %v378
  %v399 = vmul.f32 %v397, %v343
  %401 = vrot.lane.b32.xlu0 %v398, 64
  %v402 = vpop.permute.xlu0 %401
  %v404 = vmul.f32 %v397, %v402
  %406 = vrot.lane.b32.xlu0 %v404, 32
  %v407 = vpop.permute.xlu0 %406
  %v409 = vadd.f32 %v399, %v407
  %v410 = vtanh.pop %v409
  %412 = vrot.lane.b32.xlu0 %v410, 64
  %v413 = vpop.permute.xlu0 %412
  %v415 = vmul.f32 %v397, %v413
  %s416 = scalar_lea.vmem %s0, 48
  %v417 = vld [vmem:[%s416] sm:$0xff]
  %419 = vrot.lane.b32.xlu0 %v415, 32
  %v420 = vpop.permute.xlu0 %419
  %v421 = vsel %vm20, %v420, 0
  %423 = vmatpush.msra.mxu0 0.0
  %424 = vmatpush.msra.mxu0 0.0
  %425 = vmatpush.msra.mxu0 0.0
  %426 = vmatpush.msra.mxu0 0.0
  %427 = vmatpush.msra.mxu0 0.0
  %428 = vmatpush.msra.mxu0 0.0
  %429 = vmatpush.msra.mxu0 0.0
  %430 = vmatpush.msra.mxu0 0.0
  %431 = vmatpush.msra.mxu0 0.0
  %432 = vmatpush.msra.mxu0 0.0
  %433 = vmatpush.msra.mxu0 0.0
  %434 = vmatpush.msra.mxu0 0.0
  %435 = vmatpush.msra.mxu0 %v17
  %436 = vmatpush.msra.mxu0 %v16
  %437 = vmatpush.msra.mxu0 %v15
  %438 = vmatpush.msra.mxu0 %v14
  %439 = vmatmul.f32.gmra.mxu0 %v421
  %v440 = vpop.f32.mrf.mxu0
  %v441 = vadd.f32 0.0, %v440
  %442 = vdwg.mxu0
  %v443 = vadd.f32 %v417, %v441
  %v444 = vadd.f32 %v443, %v46
  %v445 = vxor.u32 %v444, 2147483648
  %v446 = vmul.f32 %v445, 1.442695
  %v447 = vpow.pop %v446
  %v448 = vadd.f32 %v447, 1.0
  %v449 = vrcp.pop %v448
  %v450 = vmul.f32 %v448, %v449
  %v451 = vsub.f32 1.0, %v450
  %v452 = vmul.f32 %v449, %v451
  %v453 = vadd.f32 %v449, %v452
  %vm454 = vweird.f32 %v448
  %vm455 = vweird.f32 %v449
  %vm456 = vmor %vm454, %vm455
  %v457 = vsel %vm456, %v449, %v453
  %v458 = vand.u32 2147483647, %v448
  %vm459 = vcmp.eq.f32.partialorder %v458, 8.507059e+37
  %v460 = vand.u32 %v448, 2147483648
  %v461 = vor.u32 1.1754944e-38, %v460
  %v462 = vsel %vm459, %v461, %v457
  %v463 = vmul.f32 1.0, %v462
  %v464 = vtanh.pop %v444
  %v465 = vmul.f32 %v463, %v409
  %467 = vrot.lane.b32.xlu0 %v464, 64
  %v468 = vpop.permute.xlu0 %467
  %v470 = vmul.f32 %v463, %v468
  %472 = vrot.lane.b32.xlu0 %v470, 32
  %v473 = vpop.permute.xlu0 %472
  %v475 = vadd.f32 %v465, %v473
  %v476 = vtanh.pop %v475
  %478 = vrot.lane.b32.xlu0 %v476, 64
  %v479 = vpop.permute.xlu0 %478
  %v481 = vmul.f32 %v463, %v479
  %s482 = scalar_lea.vmem %s0, 56
  %v483 = vld [vmem:[%s482] sm:$0xff]
  %485 = vrot.lane.b32.xlu0 %v481, 32
  %v486 = vpop.permute.xlu0 %485
  %v487 = vsel %vm20, %v486, 0
  %489 = vmatpush.msra.mxu0 0.0
  %490 = vmatpush.msra.mxu0 0.0
  %491 = vmatpush.msra.mxu0 0.0
  %492 = vmatpush.msra.mxu0 0.0
  %493 = vmatpush.msra.mxu0 0.0
  %494 = vmatpush.msra.mxu0 0.0
  %495 = vmatpush.msra.mxu0 0.0
  %496 = vmatpush.msra.mxu0 0.0
  %497 = vmatpush.msra.mxu0 0.0
  %498 = vmatpush.msra.mxu0 0.0
  %499 = vmatpush.msra.mxu0 0.0
  %500 = vmatpush.msra.mxu0 0.0
  %501 = vmatpush.msra.mxu0 %v17
  %502 = vmatpush.msra.mxu0 %v16
  %503 = vmatpush.msra.mxu0 %v15
  %504 = vmatpush.msra.mxu0 %v14
  %505 = vmatmul.f32.gmra.mxu0 %v487
  %v506 = vpop.f32.mrf.mxu0
  %v507 = vadd.f32 0.0, %v506
  %508 = vdwg.mxu0
  %v509 = vadd.f32 %v483, %v507
  %v510 = vadd.f32 %v509, %v46
  %v511 = vxor.u32 %v510, 2147483648
  %v512 = vmul.f32 %v511, 1.442695
  %v513 = vpow.pop %v512
  %v514 = vadd.f32 %v513, 1.0
  %v515 = vrcp.pop %v514
  %v516 = vmul.f32 %v514, %v515
  %v517 = vsub.f32 1.0, %v516
  %v518 = vmul.f32 %v515, %v517
  %v519 = vadd.f32 %v515, %v518
  %vm520 = vweird.f32 %v514
  %vm521 = vweird.f32 %v515
  %vm522 = vmor %vm520, %vm521
  %v523 = vsel %vm522, %v515, %v519
  %v524 = vand.u32 2147483647, %v514
  %vm525 = vcmp.eq.f32.partialorder %v524, 8.507059e+37
  %v526 = vand.u32 %v514, 2147483648
  %v527 = vor.u32 1.1754944e-38, %v526
  %v528 = vsel %vm525, %v527, %v523
  %v529 = vmul.f32 1.0, %v528
  %v530 = vtanh.pop %v510
  %v531 = vmul.f32 %v529, %v475
  %533 = vrot.lane.b32.xlu0 %v530, 64
  %v534 = vpop.permute.xlu0 %533
  %v536 = vmul.f32 %v529, %v534
  %538 = vrot.lane.b32.xlu0 %v536, 32
  %v539 = vpop.permute.xlu0 %538
  %v541 = vadd.f32 %v531, %v539
  %v542 = vtanh.pop %v541
  %544 = vrot.lane.b32.xlu0 %v542, 64
  %v545 = vpop.permute.xlu0 %544
  %v547 = vmul.f32 %v529, %v545
  %549 = vrot.lane.b32.xlu0 %v547, 32
  %v550 = vpop.permute.xlu0 %549
  %552 = vst.msk [vmem:[%s3] sm:$0xff] %vm20, %v550
  // Predicated region
  $region14: #{lstm_model_forward.1} parent=0 // pred_check
    _
  $region15: #{lstm_model_forward.1} parent=0 // pred_check_branch
    %554 = sbr.rel (0) target = $region17
  $region16: #{lstm_model_forward.1} parent=0 // pred_region
    _
  $region17: #{lstm_model_forward.1} parent=0 // pred_fallthru
    _
  // Predicated region
  $region18: #{lstm_model_forward.1} parent=0 // pred_check
    _
  $region19: #{lstm_model_forward.1} parent=0 // pred_check_branch
    %556 = sbr.rel (0) target = $region21
  $region20: #{lstm_model_forward.1} parent=0 // pred_region
    _
  $region21: #{lstm_model_forward.1} parent=0 // pred_fallthru
    _

</llo_original>
